<compile_context>
chip_gen: v5e
topology: v5e:2x2
jax: 0.10.0
libtpu: 0.0.40
codegen_flags: <defaults>
</compile_context>

<pallas_src>
import math

import jax
import jax.numpy as jnp
from jax.experimental import pallas as pl
from jax.experimental.pallas import tpu as pltpu

# ---- backbone hyper-parameters (UNetBlockStyleMLP_backbone defaults) ----
NDIM = 2
NLAYERS = 5
NBLOCKS = NLAYERS - 1
NHIDDEN = 64
TIME_EMBED_DIM = 64
FOURIER_SCALE = 1.0

# ---- EDM preconditioning constants ----
SIGMA_DATA = 0.5
SIGMA_MIN = 0.002

X_PAD = 8                      # narrow lane width for X / sigma / output (lane 2 = sigma)
TWO_PI = 2.0 * math.pi


def _edm_kernel(x_ref, emb_ref, fc0_ref, fc1_ref, fc2_ref, fc3_ref,
                de_ref, bias_ref, ow_ref, ob_ref, o_ref):
    f32 = jnp.float32
    bf16 = jnp.bfloat16

    x_pad = x_ref[...]                              # (TB, X_PAD): lanes 0..1 = x, lane 2 = sigma
    sigma = x_pad[:, NDIM:NDIM + 1]                 # (TB, 1)

    # --- EDM preconditioning (per-row scalars; VPU + EUP only, no divide) ---
    sigma = jnp.where(sigma == 0.0, SIGMA_MIN, sigma)
    sd2 = SIGMA_DATA * SIGMA_DATA
    denom = sigma * sigma + sd2
    inv_sqrt = jax.lax.rsqrt(denom)
    c_skip = (sd2 * inv_sqrt) * inv_sqrt            # sd2 / denom without a divide
    c_out = sigma * (SIGMA_DATA * inv_sqrt)
    c_in = inv_sqrt
    c_noise = jnp.log(sigma) * 0.25                 # (TB, 1)

    # --- Gaussian Fourier time embedding: one sin, phase row gives the cos half ---
    wf2pi = emb_ref[0:1, :]                         # (1, TED) = duplicated W * 2*pi
    phase = emb_ref[1:2, :]                         # (1, TED) = [0 ... 0, pi/2 ... pi/2]
    t_embed = jnp.sin(c_noise * wf2pi + phase)      # (TB, TED), f32

    # --- all four time-conditioning projections in ONE fused bf16 MXU pass, biases folded ---
    t_proj = (jnp.dot(t_embed.astype(bf16), de_ref[...],
                      preferred_element_type=f32)
              + bias_ref[...])                      # (TB, 4*NHIDDEN), f32

    # --- block 0: K=NDIM=2 input projection on the VPU (broadcast FMAs, skip MXU) ---
    fc0 = fc0_ref[...]                              # (NDIM, NHIDDEN) f32
    x0 = c_in * x_pad[:, 0:1]
    x1 = c_in * x_pad[:, 1:2]
    h = x0 * fc0[0:1, :] + x1 * fc0[1:2, :] + t_proj[:, 0:NHIDDEN]
    h = h * jax.nn.sigmoid(h)                       # SiLU (f32)

    # --- blocks 1..3: bf16 MXU matmuls against the VMEM-resident 64x64 weights ---
    for i, fc_ref in enumerate((fc1_ref, fc2_ref, fc3_ref), start=1):
        h = (jnp.dot(h.astype(bf16), fc_ref[...], preferred_element_type=f32)
             + t_proj[:, i * NHIDDEN:(i + 1) * NHIDDEN])
        h = h * jax.nn.sigmoid(h)

    # --- final Linear (64 -> X_PAD, zero-padded) + EDM skip combine ---
    f_pad = (jnp.dot(h.astype(bf16), ow_ref[...], preferred_element_type=f32)
             + ob_ref[...])
    o_ref[...] = c_skip * x_pad + c_out * f_pad     # junk in lanes >= NDIM, sliced off on host


def _round_up(n, m):
    return ((n + m - 1) // m) * m


def edm_precond_forward(x, sigma, packed, *, tile_b=4096):
    """x: (B, NDIM) f32, sigma: (B,) f32, packed: list from pack_params()."""
    B = x.shape[0]
    tb = min(tile_b, _round_up(max(B, 1), 8))       # multiple of 8 (f32 sublanes)
    B_pad = _round_up(B, tb)
    # Keep >= 2 grid steps when there is enough work so v7x's 2 TensorCores both run
    # ("parallel" batch axis); skip for tiny batches where the extra step is pure overhead.
    if B_pad // tb == 1 and tb >= 256:
        tb = _round_up(tb // 2, 8)
        B_pad = _round_up(B, tb)

    # Narrow, batch-padded view: lanes [0, NDIM) = x, lane NDIM = sigma, rest zero.
    x_lane = jnp.zeros((B_pad, X_PAD), jnp.float32)
    x_lane = x_lane.at[:B, :NDIM].set(x.astype(jnp.float32))
    x_lane = x_lane.at[:B, NDIM].set(sigma.astype(jnp.float32))

    grid = (B_pad // tb,)
    batch_spec = pl.BlockSpec((tb, X_PAD), lambda i: (i, 0))
    # Weights: full-array blocks + constant index_map -> DMA'd once, stay VMEM-resident.
    w_specs = [pl.BlockSpec(w.shape, lambda i: (0, 0)) for w in packed]

    out = pl.pallas_call(
        _edm_kernel,
        out_shape=jax.ShapeDtypeStruct((B_pad, X_PAD), jnp.float32),
        grid=grid,
        in_specs=[batch_spec] + w_specs,
        out_specs=batch_spec,
        compiler_params=pltpu.CompilerParams(
            dimension_semantics=("parallel",),
            vmem_limit_bytes=64 * 1024 * 1024),
    )(x_lane, *packed)
    return out[:B, :NDIM]


# ------------------------ deterministic parameter init ------------------------

def _linear_init(key, fan_in, fan_out):
    # PyTorch nn.Linear default: U(-1/sqrt(fan_in), 1/sqrt(fan_in)) for W and b.
    k_w, k_b = jax.random.split(key)
    bound = 1.0 / math.sqrt(fan_in)
    w = jax.random.uniform(k_w, (fan_in, fan_out), jnp.float32, -bound, bound)
    b = jax.random.uniform(k_b, (fan_out,), jnp.float32, -bound, bound)
    return w, b


def init_raw_params(key):
    key, k_f = jax.random.split(key)
    w_fourier = (jax.random.normal(k_f, (TIME_EMBED_DIM // 2,), jnp.float32)
                 * FOURIER_SCALE)
    blocks = []
    in_dim = NDIM
    for _ in range(NBLOCKS):
        key, k_fc, k_de = jax.random.split(key, 3)
        fc_w, fc_b = _linear_init(k_fc, in_dim, NHIDDEN)
        de_w, de_b = _linear_init(k_de, TIME_EMBED_DIM, NHIDDEN)
        blocks.append(dict(fc_w=fc_w, fc_b=fc_b, de_w=de_w, de_b=de_b))
        in_dim = NHIDDEN
    key, k_out = jax.random.split(key)
    out_w, out_b = _linear_init(k_out, NHIDDEN, NDIM)
    return dict(w_fourier=w_fourier, blocks=blocks, out_w=out_w, out_b=out_b)


def pack_params(raw):
    """Host-side fusion / padding / bf16 casting of raw params into the kernel layout."""
    # Row 0: duplicated Fourier weights (pre-scaled by 2*pi); row 1: phase (0 | pi/2) so that
    # sin(x + phase) reproduces [sin(x), cos(x)].
    wf2pi = jnp.concatenate([raw["w_fourier"], raw["w_fourier"]]) * TWO_PI
    phase = jnp.concatenate([jnp.zeros((TIME_EMBED_DIM // 2,), jnp.float32),
                             jnp.full((TIME_EMBED_DIM // 2,), math.pi / 2, jnp.float32)])
    emb = jnp.stack([wf2pi, phase]).astype(jnp.float32)                        # (2, TED)

    fc0 = raw["blocks"][0]["fc_w"].astype(jnp.float32)                         # (NDIM, NH), VPU path
    fc_rest = [raw["blocks"][i]["fc_w"].astype(jnp.bfloat16)
               for i in range(1, NBLOCKS)]                                     # (NH, NH) bf16 x3
    de_all = jnp.concatenate([b["de_w"] for b in raw["blocks"]],
                             axis=1).astype(jnp.bfloat16)                      # (TED, 4*NH) bf16
    bias_all = jnp.concatenate([b["fc_b"] + b["de_b"] for b in raw["blocks"]]
                               )[None, :].astype(jnp.float32)                  # (1, 4*NH) f32
    out_w_pad = jnp.zeros((NHIDDEN, X_PAD), jnp.float32
                          ).at[:, :NDIM].set(raw["out_w"]).astype(jnp.bfloat16)
    out_b_pad = jnp.zeros((1, X_PAD), jnp.float32).at[0, :NDIM].set(raw["out_b"])
    return [emb, fc0] + fc_rest + [de_all, bias_all, out_w_pad, out_b_pad]


# ------------------------ pure-JAX reference (PyTorch semantics, f32) ------------------------

def reference_forward(x, sigma, raw):
    sigma = jnp.where(sigma == 0.0, SIGMA_MIN, sigma)
    sv = sigma[:, None]
    sd2 = SIGMA_DATA ** 2
    c_skip = sd2 / (sv ** 2 + sd2)
    c_out = sv * SIGMA_DATA / jnp.sqrt(sv ** 2 + sd2)
    c_in = 1.0 / jnp.sqrt(sd2 + sv ** 2)
    c_noise = jnp.log(sigma) / 4.0

    wf = raw["w_fourier"]
    proj = c_noise[:, None] * wf[None, :] * TWO_PI
    t_embed = jnp.concatenate([jnp.sin(proj), jnp.cos(proj)], axis=-1)

    h = c_in * x
    for blk in raw["blocks"]:
        h = h @ blk["fc_w"] + blk["fc_b"] + t_embed @ blk["de_w"] + blk["de_b"]
        h = h * jax.nn.sigmoid(h)
    f = h @ raw["out_w"] + raw["out_b"]
    return c_skip * x + c_out * f


# ------------------------ main ------------------------

if __name__ == "__main__":
    key = jax.random.PRNGKey(0)
    k_p, k_x, k_s = jax.random.split(key, 3)

    raw = init_raw_params(k_p)
    packed = pack_params(raw)

    B = 8
    x = jax.random.normal(k_x, (B, NDIM), jnp.float32)
    sigma = jax.random.uniform(k_s, (B,), jnp.float32, 0.05, 10.0)
    sigma = sigma.at[0].set(0.0)          # exercise the sigma==0 -> sigma_min branch

    pred = edm_precond_forward(x, sigma, packed)
    pred = jax.block_until_ready(pred)

    ref = reference_forward(x, sigma, raw)
    assert pred.shape == (B, NDIM)
    err = float(jnp.max(jnp.abs(pred - ref)))
    # bf16 MXU operands (f32 accumulate) -> looser tolerance than the all-f32 path.
    assert jnp.allclose(pred, ref, atol=5e-2, rtol=5e-2), f"mismatch, max abs err {err}"

    print("KERNEL_OK")
</pallas_src>

<mosaic_0001>
module attributes {stable_mosaic.version = 11 : i64} {
  func.func @_edm_kernel(%arg0: i32, %arg1: memref<8x8xf32, #tpu.memory_space<vmem>>, %arg2: memref<2x64xf32, #tpu.memory_space<vmem>>, %arg3: memref<2x64xf32, #tpu.memory_space<vmem>>, %arg4: memref<64x64xbf16, #tpu.memory_space<vmem>>, %arg5: memref<64x64xbf16, #tpu.memory_space<vmem>>, %arg6: memref<64x64xbf16, #tpu.memory_space<vmem>>, %arg7: memref<64x256xbf16, #tpu.memory_space<vmem>>, %arg8: memref<1x256xf32, #tpu.memory_space<vmem>>, %arg9: memref<64x8xbf16, #tpu.memory_space<vmem>>, %arg10: memref<1x8xf32, #tpu.memory_space<vmem>>, %arg11: memref<8x8xf32, #tpu.memory_space<vmem>>) attributes {dimension_semantics = [#tpu.dimension_semantics<parallel>], iteration_bounds = array<i64: 1>, scalar_prefetch = 0 : i64, scratch_operands = 0 : i64, tpu.core_type = #tpu.core_type<tc>, window_params = [{transform_indices = @transform_0, window_bounds = array<i64: 8, 8>}, {pipeline_mode = #tpu.pipeline_mode<synchronous>, transform_indices = @transform_1, window_bounds = array<i64: 2, 64>}, {pipeline_mode = #tpu.pipeline_mode<synchronous>, transform_indices = @transform_2, window_bounds = array<i64: 2, 64>}, {pipeline_mode = #tpu.pipeline_mode<synchronous>, transform_indices = @transform_3, window_bounds = array<i64: 64, 64>}, {pipeline_mode = #tpu.pipeline_mode<synchronous>, transform_indices = @transform_4, window_bounds = array<i64: 64, 64>}, {pipeline_mode = #tpu.pipeline_mode<synchronous>, transform_indices = @transform_5, window_bounds = array<i64: 64, 64>}, {pipeline_mode = #tpu.pipeline_mode<synchronous>, transform_indices = @transform_6, window_bounds = array<i64: 64, 256>}, {pipeline_mode = #tpu.pipeline_mode<synchronous>, transform_indices = @transform_7, window_bounds = array<i64: 1, 256>}, {pipeline_mode = #tpu.pipeline_mode<synchronous>, transform_indices = @transform_8, window_bounds = array<i64: 64, 8>}, {pipeline_mode = #tpu.pipeline_mode<synchronous>, transform_indices = @transform_9, window_bounds = array<i64: 1, 8>}, {transform_indices = @transform_10, window_bounds = array<i64: 8, 8>}]} {
    %c0 = arith.constant 0 : index
    %c0_0 = arith.constant 0 : index
    %0 = vector.load %arg1[%c0, %c0_0] : memref<8x8xf32, #tpu.memory_space<vmem>>, vector<8x8xf32>
    %1 = vector.extract_strided_slice %0 {offsets = [0, 2], sizes = [8, 1], strides = [1, 1]} : vector<8x8xf32> to vector<8x1xf32>
    %cst = arith.constant 0.000000e+00 : f32
    %2 = vector.broadcast %cst : f32 to vector<8x1xf32>
    %3 = arith.cmpf oeq, %1, %2 : vector<8x1xf32>
    %cst_1 = arith.constant 2.000000e-03 : f32
    %4 = vector.broadcast %cst_1 : f32 to vector<8x1xf32>
    %5 = arith.select %3, %4, %1 : vector<8x1xi1>, vector<8x1xf32>
    %6 = arith.mulf %5, %5 : vector<8x1xf32>
    %cst_2 = arith.constant 2.500000e-01 : f32
    %7 = vector.broadcast %cst_2 : f32 to vector<8x1xf32>
    %8 = arith.addf %6, %7 : vector<8x1xf32>
    %9 = math.rsqrt %8 : vector<8x1xf32>
    %cst_3 = arith.constant 2.500000e-01 : f32
    %10 = vector.broadcast %cst_3 : f32 to vector<8x1xf32>
    %11 = arith.mulf %10, %9 : vector<8x1xf32>
    %12 = arith.mulf %11, %9 : vector<8x1xf32>
    %cst_4 = arith.constant 5.000000e-01 : f32
    %13 = vector.broadcast %cst_4 : f32 to vector<8x1xf32>
    %14 = arith.mulf %13, %9 : vector<8x1xf32>
    %15 = arith.mulf %5, %14 : vector<8x1xf32>
    %16 = math.log %5 : vector<8x1xf32>
    %cst_5 = arith.constant 2.500000e-01 : f32
    %17 = vector.broadcast %cst_5 : f32 to vector<8x1xf32>
    %18 = arith.mulf %16, %17 : vector<8x1xf32>
    %c0_6 = arith.constant 0 : index
    %c0_7 = arith.constant 0 : index
    %19 = vector.load %arg2[%c0_6, %c0_7] : memref<2x64xf32, #tpu.memory_space<vmem>>, vector<1x64xf32>
    %c1 = arith.constant 1 : index
    %c0_8 = arith.constant 0 : index
    %20 = vector.load %arg2[%c1, %c0_8] : memref<2x64xf32, #tpu.memory_space<vmem>>, vector<1x64xf32>
    %21 = vector.broadcast %18 : vector<8x1xf32> to vector<8x64xf32>
    %22 = vector.broadcast %19 : vector<1x64xf32> to vector<8x64xf32>
    %23 = arith.mulf %21, %22 : vector<8x64xf32>
    %24 = vector.broadcast %20 : vector<1x64xf32> to vector<8x64xf32>
    %25 = arith.addf %23, %24 : vector<8x64xf32>
    %26 = math.sin %25 : vector<8x64xf32>
    %27 = arith.truncf %26 : vector<8x64xf32> to vector<8x64xbf16>
    %c0_9 = arith.constant 0 : index
    %c0_10 = arith.constant 0 : index
    %28 = vector.load %arg7[%c0_9, %c0_10] : memref<64x256xbf16, #tpu.memory_space<vmem>>, vector<64x256xbf16>
    %cst_11 = arith.constant dense<0.000000e+00> : vector<8x256xf32>
    %29 = tpu.matmul %27, %28, %cst_11 {dimension_numbers = #tpu.dot_dimension_numbers<[1], [0], [0], [1], [0, 0, 1, 1], [], []>} : vector<8x64xbf16>, vector<64x256xbf16>, vector<8x256xf32> -> vector<8x256xf32>
    %c0_12 = arith.constant 0 : index
    %c0_13 = arith.constant 0 : index
    %30 = vector.load %arg8[%c0_12, %c0_13] : memref<1x256xf32, #tpu.memory_space<vmem>>, vector<1x256xf32>
    %31 = vector.broadcast %30 : vector<1x256xf32> to vector<8x256xf32>
    %32 = arith.addf %29, %31 : vector<8x256xf32>
    %c0_14 = arith.constant 0 : index
    %c0_15 = arith.constant 0 : index
    %33 = vector.load %arg3[%c0_14, %c0_15] : memref<2x64xf32, #tpu.memory_space<vmem>>, vector<2x64xf32>
    %34 = vector.extract_strided_slice %0 {offsets = [0, 0], sizes = [8, 1], strides = [1, 1]} : vector<8x8xf32> to vector<8x1xf32>
    %35 = arith.mulf %9, %34 : vector<8x1xf32>
    %36 = vector.extract_strided_slice %0 {offsets = [0, 1], sizes = [8, 1], strides = [1, 1]} : vector<8x8xf32> to vector<8x1xf32>
    %37 = arith.mulf %9, %36 : vector<8x1xf32>
    %38 = vector.extract_strided_slice %33 {offsets = [0, 0], sizes = [1, 64], strides = [1, 1]} : vector<2x64xf32> to vector<1x64xf32>
    %39 = vector.broadcast %35 : vector<8x1xf32> to vector<8x64xf32>
    %40 = vector.broadcast %38 : vector<1x64xf32> to vector<8x64xf32>
    %41 = arith.mulf %39, %40 : vector<8x64xf32>
    %42 = vector.extract_strided_slice %33 {offsets = [1, 0], sizes = [1, 64], strides = [1, 1]} : vector<2x64xf32> to vector<1x64xf32>
    %43 = vector.broadcast %37 : vector<8x1xf32> to vector<8x64xf32>
    %44 = vector.broadcast %42 : vector<1x64xf32> to vector<8x64xf32>
    %45 = arith.mulf %43, %44 : vector<8x64xf32>
    %46 = arith.addf %41, %45 : vector<8x64xf32>
    %47 = vector.extract_strided_slice %32 {offsets = [0, 0], sizes = [8, 64], strides = [1, 1]} : vector<8x256xf32> to vector<8x64xf32>
    %48 = arith.addf %46, %47 : vector<8x64xf32>
    %49 = arith.negf %48 : vector<8x64xf32>
    %50 = math.exp %49 : vector<8x64xf32>
    %cst_16 = arith.constant 1.000000e+00 : f32
    %51 = vector.broadcast %cst_16 : f32 to vector<8x64xf32>
    %52 = arith.addf %51, %50 : vector<8x64xf32>
    %53 = arith.divf %51, %52 : vector<8x64xf32>
    %54 = arith.mulf %48, %53 : vector<8x64xf32>
    %55 = arith.truncf %54 : vector<8x64xf32> to vector<8x64xbf16>
    %c0_17 = arith.constant 0 : index
    %c0_18 = arith.constant 0 : index
    %56 = vector.load %arg4[%c0_17, %c0_18] : memref<64x64xbf16, #tpu.memory_space<vmem>>, vector<64x64xbf16>
    %cst_19 = arith.constant dense<0.000000e+00> : vector<8x64xf32>
    %57 = tpu.matmul %55, %56, %cst_19 {dimension_numbers = #tpu.dot_dimension_numbers<[1], [0], [0], [1], [0, 0, 1, 1], [], []>} : vector<8x64xbf16>, vector<64x64xbf16>, vector<8x64xf32> -> vector<8x64xf32>
    %58 = vector.extract_strided_slice %32 {offsets = [0, 64], sizes = [8, 64], strides = [1, 1]} : vector<8x256xf32> to vector<8x64xf32>
    %59 = arith.addf %57, %58 : vector<8x64xf32>
    %60 = arith.negf %59 : vector<8x64xf32>
    %61 = math.exp %60 : vector<8x64xf32>
    %cst_20 = arith.constant 1.000000e+00 : f32
    %62 = vector.broadcast %cst_20 : f32 to vector<8x64xf32>
    %63 = arith.addf %62, %61 : vector<8x64xf32>
    %64 = arith.divf %62, %63 : vector<8x64xf32>
    %65 = arith.mulf %59, %64 : vector<8x64xf32>
    %66 = arith.truncf %65 : vector<8x64xf32> to vector<8x64xbf16>
    %c0_21 = arith.constant 0 : index
    %c0_22 = arith.constant 0 : index
    %67 = vector.load %arg5[%c0_21, %c0_22] : memref<64x64xbf16, #tpu.memory_space<vmem>>, vector<64x64xbf16>
    %cst_23 = arith.constant dense<0.000000e+00> : vector<8x64xf32>
    %68 = tpu.matmul %66, %67, %cst_23 {dimension_numbers = #tpu.dot_dimension_numbers<[1], [0], [0], [1], [0, 0, 1, 1], [], []>} : vector<8x64xbf16>, vector<64x64xbf16>, vector<8x64xf32> -> vector<8x64xf32>
    %69 = vector.extract_strided_slice %32 {offsets = [0, 128], sizes = [8, 64], strides = [1, 1]} : vector<8x256xf32> to vector<8x64xf32>
    %70 = arith.addf %68, %69 : vector<8x64xf32>
    %71 = arith.negf %70 : vector<8x64xf32>
    %72 = math.exp %71 : vector<8x64xf32>
    %cst_24 = arith.constant 1.000000e+00 : f32
    %73 = vector.broadcast %cst_24 : f32 to vector<8x64xf32>
    %74 = arith.addf %73, %72 : vector<8x64xf32>
    %75 = arith.divf %73, %74 : vector<8x64xf32>
    %76 = arith.mulf %70, %75 : vector<8x64xf32>
    %77 = arith.truncf %76 : vector<8x64xf32> to vector<8x64xbf16>
    %c0_25 = arith.constant 0 : index
    %c0_26 = arith.constant 0 : index
    %78 = vector.load %arg6[%c0_25, %c0_26] : memref<64x64xbf16, #tpu.memory_space<vmem>>, vector<64x64xbf16>
    %cst_27 = arith.constant dense<0.000000e+00> : vector<8x64xf32>
    %79 = tpu.matmul %77, %78, %cst_27 {dimension_numbers = #tpu.dot_dimension_numbers<[1], [0], [0], [1], [0, 0, 1, 1], [], []>} : vector<8x64xbf16>, vector<64x64xbf16>, vector<8x64xf32> -> vector<8x64xf32>
    %80 = vector.extract_strided_slice %32 {offsets = [0, 192], sizes = [8, 64], strides = [1, 1]} : vector<8x256xf32> to vector<8x64xf32>
    %81 = arith.addf %79, %80 : vector<8x64xf32>
    %82 = arith.negf %81 : vector<8x64xf32>
    %83 = math.exp %82 : vector<8x64xf32>
    %cst_28 = arith.constant 1.000000e+00 : f32
    %84 = vector.broadcast %cst_28 : f32 to vector<8x64xf32>
    %85 = arith.addf %84, %83 : vector<8x64xf32>
    %86 = arith.divf %84, %85 : vector<8x64xf32>
    %87 = arith.mulf %81, %86 : vector<8x64xf32>
    %88 = arith.truncf %87 : vector<8x64xf32> to vector<8x64xbf16>
    %c0_29 = arith.constant 0 : index
    %c0_30 = arith.constant 0 : index
    %89 = vector.load %arg9[%c0_29, %c0_30] : memref<64x8xbf16, #tpu.memory_space<vmem>>, vector<64x8xbf16>
    %cst_31 = arith.constant dense<0.000000e+00> : vector<8x8xf32>
    %90 = tpu.matmul %88, %89, %cst_31 {dimension_numbers = #tpu.dot_dimension_numbers<[1], [0], [0], [1], [0, 0, 1, 1], [], []>} : vector<8x64xbf16>, vector<64x8xbf16>, vector<8x8xf32> -> vector<8x8xf32>
    %c0_32 = arith.constant 0 : index
    %c0_33 = arith.constant 0 : index
    %91 = vector.load %arg10[%c0_32, %c0_33] : memref<1x8xf32, #tpu.memory_space<vmem>>, vector<1x8xf32>
    %92 = vector.broadcast %91 : vector<1x8xf32> to vector<8x8xf32>
    %93 = arith.addf %90, %92 : vector<8x8xf32>
    %94 = vector.broadcast %12 : vector<8x1xf32> to vector<8x8xf32>
    %95 = arith.mulf %94, %0 : vector<8x8xf32>
    %96 = vector.broadcast %15 : vector<8x1xf32> to vector<8x8xf32>
    %97 = arith.mulf %96, %93 : vector<8x8xf32>
    %98 = arith.addf %95, %97 : vector<8x8xf32>
    %c0_34 = arith.constant 0 : index
    %c0_35 = arith.constant 0 : index
    %99 = vector.load %arg11[%c0_34, %c0_35] : memref<8x8xf32, #tpu.memory_space<vmem>>, vector<8x8xf32>
    tpu.vector_store %arg11[%c0_34, %c0_35], %98 {strides = array<i32>} : memref<8x8xf32, #tpu.memory_space<vmem>>, vector<8x8xf32>,
    return
  }
  func.func @transform_0(%arg0: i32) -> (i32, i32) {
    %c0_i32 = arith.constant 0 : i32
    %c0_i32_0 = arith.constant 0 : i32
    return %arg0, %c0_i32 : i32, i32
  }
  func.func @transform_1(%arg0: i32) -> (i32, i32) {
    %c0_i32 = arith.constant 0 : i32
    %c0_i32_0 = arith.constant 0 : i32
    %c0_i32_1 = arith.constant 0 : i32
    return %c0_i32, %c0_i32_0 : i32, i32
  }
  func.func @transform_2(%arg0: i32) -> (i32, i32) {
    %c0_i32 = arith.constant 0 : i32
    %c0_i32_0 = arith.constant 0 : i32
    %c0_i32_1 = arith.constant 0 : i32
    return %c0_i32, %c0_i32_0 : i32, i32
  }
  func.func @transform_3(%arg0: i32) -> (i32, i32) {
    %c0_i32 = arith.constant 0 : i32
    %c0_i32_0 = arith.constant 0 : i32
    %c0_i32_1 = arith.constant 0 : i32
    return %c0_i32, %c0_i32_0 : i32, i32
  }
  func.func @transform_4(%arg0: i32) -> (i32, i32) {
    %c0_i32 = arith.constant 0 : i32
    %c0_i32_0 = arith.constant 0 : i32
    %c0_i32_1 = arith.constant 0 : i32
    return %c0_i32, %c0_i32_0 : i32, i32
  }
  func.func @transform_5(%arg0: i32) -> (i32, i32) {
    %c0_i32 = arith.constant 0 : i32
    %c0_i32_0 = arith.constant 0 : i32
    %c0_i32_1 = arith.constant 0 : i32
    return %c0_i32, %c0_i32_0 : i32, i32
  }
  func.func @transform_6(%arg0: i32) -> (i32, i32) {
    %c0_i32 = arith.constant 0 : i32
    %c0_i32_0 = arith.constant 0 : i32
    %c0_i32_1 = arith.constant 0 : i32
    return %c0_i32, %c0_i32_0 : i32, i32
  }
  func.func @transform_7(%arg0: i32) -> (i32, i32) {
    %c0_i32 = arith.constant 0 : i32
    %c0_i32_0 = arith.constant 0 : i32
    %c0_i32_1 = arith.constant 0 : i32
    return %c0_i32, %c0_i32_0 : i32, i32
  }
  func.func @transform_8(%arg0: i32) -> (i32, i32) {
    %c0_i32 = arith.constant 0 : i32
    %c0_i32_0 = arith.constant 0 : i32
    %c0_i32_1 = arith.constant 0 : i32
    return %c0_i32, %c0_i32_0 : i32, i32
  }
  func.func @transform_9(%arg0: i32) -> (i32, i32) {
    %c0_i32 = arith.constant 0 : i32
    %c0_i32_0 = arith.constant 0 : i32
    %c0_i32_1 = arith.constant 0 : i32
    return %c0_i32, %c0_i32_0 : i32, i32
  }
  func.func @transform_10(%arg0: i32) -> (i32, i32) {
    %c0_i32 = arith.constant 0 : i32
    %c0_i32_0 = arith.constant 0 : i32
    return %arg0, %c0_i32 : i32, i32
  }
}

</mosaic_0001>

<llo_original>
// kernel: tpu_custom_call.1
$region0: #{tpu_custom_call.1}
  #allocation0 [shape = 'u32[]', space=smem, size = 0x4, offset = 0x4, fixed_abs, tag = 'smem constant byte address 0x4 - core index']
  #allocation1 [shape = 'u32[72,128]{1,0:T(1,128)}', space=vmem, size = 0x9000, scoped, tag = 'internal scratch']
  %s0 = inlined_call_operand.hbm [shape: f32[8,8], index: 0, kind: input, shape index: {}]
  %s1 = inlined_call_operand.vmem [shape: f32[2,64], index: 1, kind: input, shape index: {}]
  %s2 = inlined_call_operand.vmem [shape: f32[2,64], index: 2, kind: input, shape index: {}]
  %s3 = inlined_call_operand.vmem [shape: bf16[64,64], index: 3, kind: input, shape index: {}]
  %s4 = inlined_call_operand.hbm [shape: bf16[64,64], index: 4, kind: input, shape index: {}]
  %s5 = inlined_call_operand.hbm [shape: bf16[64,64], index: 5, kind: input, shape index: {}]
  %s6 = inlined_call_operand.hbm [shape: bf16[64,256], index: 6, kind: input, shape index: {}]
  %s7 = inlined_call_operand.vmem [shape: f32[1,256], index: 7, kind: input, shape index: {}]
  %s8 = inlined_call_operand.vmem [shape: bf16[64,8], index: 8, kind: input, shape index: {}]
  %s9 = inlined_call_operand.vmem [shape: f32[1,8], index: 9, kind: input, shape index: {}]
  %s10 = inlined_call_operand.hbm [shape: f32[8,8], index: 10, kind: output, shape index: {}]
  %s11 = sld [smem:[#allocation0]]
  $region66: #{tpu_custom_call.1} parent=0
    _
  %s13 = ssub.s32 1, %s11
  %s14 = scalar_select 0, %s13, %s11
  $region1: #{tpu_custom_call.1} parent=0
    #allocation2 [shape = 'u8[4096]{0}', space=vmem, size = 0x1000, scoped, tag = 'input window, operand 0, single buffered']
    #allocation3 [shape = 's32[1]{0}', space=sflag, size = 0x4, scoped, tag = 'scoped memory for tpu_custom_call.1']
    #allocation4 [shape = 's32[1]{0}', space=sflag, size = 0x4, scoped, tag = 'scoped memory for tpu_custom_call.1']
    #allocation5 [shape = 'u8[16384]{0}', space=vmem, size = 0x4000, scoped, tag = 'input window, operand 4, single buffered']
    #allocation6 [shape = 's32[1]{0}', space=sflag, size = 0x4, scoped, tag = 'scoped memory for tpu_custom_call.1']
    #allocation7 [shape = 'u8[16384]{0}', space=vmem, size = 0x4000, scoped, tag = 'input window, operand 5, single buffered']
    #allocation8 [shape = 'u8[32768]{0}', space=vmem, size = 0x8000, scoped, tag = 'input window, operand 6, single buffered']
    #allocation9 [shape = 's32[1]{0}', space=sflag, size = 0x4, scoped, tag = 'scoped memory for tpu_custom_call.1']
    #allocation10 [shape = 'u8[4096]{0}', space=vmem, size = 0x1000, scoped, tag = 'output window, operand 0, single buffered']
    %15 = vsyncpa [#allocation3], 0
    %16 = vsyncpa [#allocation6], 0
    %17 = vsyncpa [#allocation9], 0
    %18 = vsyncpa [#allocation4], 0
    // Predicated region
    $region2: #{tpu_custom_call.1} parent=1 // pred_check
      _
    $region3: #{tpu_custom_call.1} parent=1 // pred_check_branch
      %20 = sbr.rel (0) target = $region5
    $region4: #{tpu_custom_call.1} parent=1 // pred_region
      %22 = vsyncadd [#allocation3], 0
      %s24 = sshll.u32 %s0, 4
      %s25 = int_to_ptr.hbm [resolvable:$true] %s24
      %s26 = sshll.u32 [#allocation2], 4
      %s27 = int_to_ptr.vmem [resolvable:$true] %s26
      %29 = dma.hbm_to_vmem [thread:$0]  %s25, 128, %s27, [#allocation3]
    $region5: #{tpu_custom_call.1} parent=1 // pred_fallthru
      _
    // Predicated region
    $region6: #{tpu_custom_call.1} parent=1 // pred_check
      _
    $region7: #{tpu_custom_call.1} parent=1 // pred_check_branch
      %31 = sbr.rel (0) target = $region9
    $region8: #{tpu_custom_call.1} parent=1 // pred_region
      _
    $region9: #{tpu_custom_call.1} parent=1 // pred_fallthru
      _
    // Predicated region
    $region10: #{tpu_custom_call.1} parent=1 // pred_check
      _
    $region11: #{tpu_custom_call.1} parent=1 // pred_check_branch
      %33 = sbr.rel (0) target = $region13
    $region12: #{tpu_custom_call.1} parent=1 // pred_region
      _
    $region13: #{tpu_custom_call.1} parent=1 // pred_fallthru
      _
    // Predicated region
    $region14: #{tpu_custom_call.1} parent=1 // pred_check
      _
    $region15: #{tpu_custom_call.1} parent=1 // pred_check_branch
      %35 = sbr.rel (0) target = $region17
    $region16: #{tpu_custom_call.1} parent=1 // pred_region
      _
    $region17: #{tpu_custom_call.1} parent=1 // pred_fallthru
      _
    // Predicated region
    $region18: #{tpu_custom_call.1} parent=1 // pred_check
      _
    $region19: #{tpu_custom_call.1} parent=1 // pred_check_branch
      %37 = sbr.rel (0) target = $region21
    $region20: #{tpu_custom_call.1} parent=1 // pred_region
      %39 = vsyncadd [#allocation6], 0
      %s40 = sshll.u32 %s4, 4
      %s41 = int_to_ptr.hbm [resolvable:$true] %s40
      %s42 = sshll.u32 [#allocation5], 4
      %s43 = int_to_ptr.vmem [resolvable:$true] %s42
      %48 = dma.hbm_to_vmem [thread:$0]  %s41, 512, %s43, [#allocation6], 64, 64, 4
    $region21: #{tpu_custom_call.1} parent=1 // pred_fallthru
      _
    // Predicated region
    $region22: #{tpu_custom_call.1} parent=1 // pred_check
      _
    $region23: #{tpu_custom_call.1} parent=1 // pred_check_branch
      %50 = sbr.rel (0) target = $region25
    $region24: #{tpu_custom_call.1} parent=1 // pred_region
      %52 = vsyncadd [#allocation6], 0
      %s53 = sshll.u32 %s5, 4
      %s54 = int_to_ptr.hbm [resolvable:$true] %s53
      %s55 = sshll.u32 [#allocation7], 4
      %s56 = int_to_ptr.vmem [resolvable:$true] %s55
      %61 = dma.hbm_to_vmem [thread:$0]  %s54, 512, %s56, [#allocation6], 64, 64, 4
    $region25: #{tpu_custom_call.1} parent=1 // pred_fallthru
      _
    // Predicated region
    $region26: #{tpu_custom_call.1} parent=1 // pred_check
      _
    $region27: #{tpu_custom_call.1} parent=1 // pred_check_branch
      %63 = sbr.rel (0) target = $region29
    $region28: #{tpu_custom_call.1} parent=1 // pred_region
      %65 = vsyncadd [#allocation9], 0
      %s66 = sshll.u32 %s6, 4
      %s67 = int_to_ptr.hbm [resolvable:$true] %s66
      %s68 = sshll.u32 [#allocation8], 4
      %s69 = int_to_ptr.vmem [resolvable:$true] %s68
      %74 = dma.hbm_to_vmem [thread:$0]  %s67, 1024, %s69, [#allocation9], 128, 128, 8
    $region29: #{tpu_custom_call.1} parent=1 // pred_fallthru
      _
    // Predicated region
    $region30: #{tpu_custom_call.1} parent=1 // pred_check
      _
    $region31: #{tpu_custom_call.1} parent=1 // pred_check_branch
      %76 = sbr.rel (0) target = $region33
    $region32: #{tpu_custom_call.1} parent=1 // pred_region
      _
    $region33: #{tpu_custom_call.1} parent=1 // pred_fallthru
      _
    // Predicated region
    $region34: #{tpu_custom_call.1} parent=1 // pred_check
      _
    $region35: #{tpu_custom_call.1} parent=1 // pred_check_branch
      %78 = sbr.rel (0) target = $region37
    $region36: #{tpu_custom_call.1} parent=1 // pred_region
      _
    $region37: #{tpu_custom_call.1} parent=1 // pred_fallthru
      _
    // Predicated region
    $region38: #{tpu_custom_call.1} parent=1 // pred_check
      _
    $region39: #{tpu_custom_call.1} parent=1 // pred_check_branch
      %80 = sbr.rel (0) target = $region41
    $region40: #{tpu_custom_call.1} parent=1 // pred_region
      _
    $region41: #{tpu_custom_call.1} parent=1 // pred_fallthru
      _
    // Predicated region
    $region42: #{tpu_custom_call.1} parent=1 // pred_check
      _
    $region43: #{tpu_custom_call.1} parent=1 // pred_check_branch
      %82 = sbr.rel (0) target = $region45
    $region44: #{tpu_custom_call.1} parent=1 // pred_region
      %84 = dma.done [#allocation3], 128
    $region45: #{tpu_custom_call.1} parent=1 // pred_fallthru
      _
    // Predicated region
    $region46: #{tpu_custom_call.1} parent=1 // pred_check
      _
    $region47: #{tpu_custom_call.1} parent=1 // pred_check_branch
      %86 = sbr.rel (0) target = $region49
    $region48: #{tpu_custom_call.1} parent=1 // pred_region
      %88 = dma.done [#allocation6], 512
    $region49: #{tpu_custom_call.1} parent=1 // pred_fallthru
      _
    // Predicated region
    $region50: #{tpu_custom_call.1} parent=1 // pred_check
      _
    $region51: #{tpu_custom_call.1} parent=1 // pred_check_branch
      %90 = sbr.rel (0) target = $region53
    $region52: #{tpu_custom_call.1} parent=1 // pred_region
      %92 = dma.done [#allocation6], 512
    $region53: #{tpu_custom_call.1} parent=1 // pred_fallthru
      _
    // Predicated region
    $region54: #{tpu_custom_call.1} parent=1 // pred_check
      _
    $region55: #{tpu_custom_call.1} parent=1 // pred_check_branch
      %94 = sbr.rel (0) target = $region57
    $region56: #{tpu_custom_call.1} parent=1 // pred_region
      %96 = dma.done [#allocation9], 1024
    $region57: #{tpu_custom_call.1} parent=1 // pred_fallthru
      _
    %v98 = vld [vmem:[#allocation2] sm:$0xff]
    %vm99 = vcmp.eq.f32.partialorder %v98, 0.0
    %v100 = vsel %vm99, 0.002, %v98
    %v101 = vmul.f32 %v100, %v100
    %v102 = vadd.f32 %v101, 0.25
    %v103 = vrsqrt.pop %v102
    %v104 = vmul.f32 %v103, %v102
    %v105 = vmul.f32 %v104, %v103
    %v106 = vmul.f32 0.5, %v105
    %v107 = vsub.f32 1.5, %v106
    %v108 = vmul.f32 %v103, %v107
    %vm109 = vweird.f32 %v102
    %vm110 = vweird.f32 %v103
    %vm111 = vmor %vm109, %vm110
    %v112 = vsel %vm111, %v103, %v108
    %v113 = vmul.f32 %v112, 0.25
    %v114 = vmul.f32 %v113, %v112
    %v115 = vmul.f32 %v112, 0.5
    %v116 = vmul.f32 %v100, %v115
    %v117 = vlog2.pop %v100
    %v118 = vmul.f32 %v117, 0.6931472
    %v119 = vmul.f32 %v118, 0.25
    %v120 = vld [vmem:[%s1] sm:$0x1]
    %v121 = vld [vmem:[%s1 + $0x1] sm:$0x1]
    %123 = vset.pattern.permute.xlu0 2
    %124 = vperm.xlu0 %123, %v119
    %v125 = vpop.permute.xlu0 %124
    %v127 = vperm.slane %v120, 0
    %v128 = vmul.f32 %v125, %v127
    %v129 = vperm.slane %v121, 0
    %v130 = vadd.f32 %v128, %v129
    %v131 = vand.u32 2147483647, %v130
    %vm132 = vcmp.le.f32.partialorder %v131, 0.7853982
    %vm133 = vcmp.lt.s32.totalorder %v130, 0
    %v134 = vand.u32 %v130, 2139095040
    %v135 = vshrl.u32 %v134, 23
    %v136 = vsub.s32 %v135, 127
    %v137 = vand.u32 2147483647, %v130
    %v138 = vand.u32 %v137, 8388607
    %v139 = vor.u32 %v138, 8388608
    %v140 = vsub.s32 0, %v139
    %v141 = vadd.s32 %v136, 1
    %vm142 = vcmp.gt.s32.totalorder %v141, 0
    %v143 = vsel %vm142, %v141, 0
    %v144 = vshrl.u32 %v143, 5
    %v145 = vand.u32 %v143, 31
    %v146 = vsub.s32 32, %v145
    %v147 = vshrl.u32 683565275, %v146
    %v148 = vshll.u32 683565275, %v145
    %v149 = vshrl.u32 2475754826, %v146
    %v150 = vor.u32 %v148, %v149
    %v151 = vshll.u32 2475754826, %v145
    %v152 = vshrl.u32 2131351028, %v146
    %v153 = vor.u32 %v151, %v152
    %v154 = vshll.u32 2131351028, %v145
    %v155 = vshrl.u32 2102212464, %v146
    %v156 = vor.u32 %v154, %v155
    %v157 = vshll.u32 2102212464, %v145
    %v158 = vshrl.u32 920167782, %v146
    %v159 = vor.u32 %v157, %v158
    %v160 = vshll.u32 920167782, %v145
    %v161 = vshrl.u32 1326507024, %v146
    %v162 = vor.u32 %v160, %v161
    %vm163 = vcmp.lt.s32.totalorder %v144, 1
    %vm164 = vcmp.lt.s32.totalorder %v144, 2
    %vm165 = vcmp.lt.s32.totalorder %v144, 3
    %vm166 = vcmp.lt.s32.totalorder %v144, 4
    %v167 = vsel %vm163, %v147, %v150
    %v168 = vsel %vm166, %v156, 2102212464
    %v169 = vsel %vm165, %v153, %v168
    %v170 = vsel %vm164, %v167, %v169
    %v171 = vsel %vm163, %v150, %v153
    %v172 = vsel %vm166, %v159, 920167782
    %v173 = vsel %vm165, %v156, %v172
    %v174 = vsel %vm164, %v171, %v173
    %v175 = vsel %vm163, %v153, %v156
    %v176 = vsel %vm166, %v162, 1326507024
    %v177 = vsel %vm165, %v159, %v176
    %v178 = vsel %vm164, %v175, %v177
    %v179 = vshll.u32 %v139, 8
    %v180 = vand.u32 %v179, 65535
    %v181 = vshrl.u32 %v179, 16
    %v182 = vand.u32 %v178, 65535
    %v183 = vshrl.u32 %v178, 16
    %v184 = vmul.u32 %v180, %v182
    %v185 = vmul.u32 %v180, %v183
    %v186 = vmul.u32 %v181, %v182
    %v187 = vmul.u32 %v181, %v183
    %v188 = vshll.u32 %v185, 16
    %v189 = vshrl.u32 %v185, 16
    %v190 = vshll.u32 %v186, 16
    %v191 = vshrl.u32 %v186, 16
    %vm192 = vc.u32 %v184, %v188
    %v193 = vsel %vm192, 1, 0
    %v194 = vadd.s32 %v184, %v188
    %v195 = vadd.s32 %v187, %v193
    %vm196 = vc.u32 %v194, %v190
    %v197 = vsel %vm196, 1, 0
    %v198 = vadd.s32 %v194, %v190
    %v199 = vadd.s32 %v195, %v197
    %v200 = vadd.s32 %v199, %v189
    %v201 = vadd.s32 %v200, %v191
    %v202 = vand.u32 %v179, 65535
    %v203 = vshrl.u32 %v179, 16
    %v204 = vand.u32 %v174, 65535
    %v205 = vshrl.u32 %v174, 16
    %v206 = vmul.u32 %v202, %v204
    %v207 = vmul.u32 %v202, %v205
    %v208 = vmul.u32 %v203, %v204
    %v209 = vmul.u32 %v203, %v205
    %v210 = vshll.u32 %v207, 16
    %v211 = vshrl.u32 %v207, 16
    %v212 = vshll.u32 %v208, 16
    %v213 = vshrl.u32 %v208, 16
    %vm214 = vc.u32 %v206, %v210
    %v215 = vsel %vm214, 1, 0
    %v216 = vadd.s32 %v206, %v210
    %v217 = vadd.s32 %v209, %v215
    %vm218 = vc.u32 %v216, %v212
    %v219 = vsel %vm218, 1, 0
    %v220 = vadd.s32 %v216, %v212
    %v221 = vadd.s32 %v217, %v219
    %v222 = vadd.s32 %v221, %v211
    %v223 = vadd.s32 %v222, %v213
    %v224 = vmul.u32 %v179, %v170
    %v225 = vadd.s32 %v201, %v220
    %vm226 = vc.u32 %v201, %v220
    %v227 = vadd.s32 %v223, 1
    %v228 = vsel %vm226, %v227, %v223
    %v229 = vadd.s32 %v224, %v228
    %v230 = vadd.s32 %v229, 536870912
    %v231 = vshrl.u32 %v230, 30
    %v232 = vshll.u32 %v231, 30
    %v233 = vsub.s32 %v229, %v232
    %vm234 = vcmp.lt.s32.totalorder %v233, 0
    %v235 = vsub.s32 0, %v233
    %v236 = vsel %vm234, %v235, %v233
    %v237 = vclz %v236
    %v238 = vsub.s32 %v237, 2
    %vm239 = vcmp.gt.s32.totalorder 0, %v238
    %v240 = vsel %vm239, 0, %v238
    %v241 = vsub.s32 32, %v240
    %v242 = vshll.u32 %v233, %v240
    %v243 = vshrl.u32 %v225, %v241
    %v244 = vor.u32 %v242, %v243
    %v245 = vsub.s32 4294967266, %v240
    %v246 = vadd.s32 %v245, 127
    %v247 = vshll.u32 %v246, 23
    %v248 = vor.u32 4788187, %v247
    %v249 = vand.u32 2147483647, %v248
    %v251 = vcvt.s32.f32 %v244
    %v252 = vmul.f32 %v251, %v249
    %v253 = vxor.u32 %v252, 2147483648
    %v254 = vsel %vm133, %v253, %v252
    %v255 = vsub.s32 4, %v231
    %v256 = vsel %vm133, %v255, %v231
    %v257 = vsel %vm132, %v130, %v254
    %v258 = vsel %vm132, 0, %v256
    %v259 = vmul.f32 %v257, %v257
    %v260 = vmul.f32 %v259, -0.001358992
    %v261 = vadd.f32 %v260, 0.041655596
    %v262 = vmul.f32 %v259, %v261
    %v263 = vadd.f32 %v262, -0.4999988
    %v264 = vmul.f32 %v259, %v263
    %v265 = vadd.f32 1.0, %v264
    %v266 = vmul.f32 %v257, %v257
    %v267 = vmul.f32 %v266, -0.00019511016
    %v268 = vadd.f32 %v267, 0.008332121
    %v269 = vmul.f32 %v266, %v268
    %v270 = vadd.f32 %v269, -0.16666654
    %v271 = vmul.f32 %v266, %v270
    %v272 = vadd.f32 %v271, 1.0
    %v273 = vmul.f32 %v272, %v257
    %vm274 = vweird.f32 %v130
    %v275 = vadd.s32 %v258, 3
    %v276 = vand.u32 %v275, 3
    %vm277 = vcmp.lt.s32.totalorder %v276, 2
    %vm278 = vcmp.eq.s32.totalorder %v276, 0
    %v279 = vxor.u32 %v273, 2147483648
    %v280 = vsel %vm278, %v265, %v279
    %vm281 = vcmp.eq.s32.totalorder %v276, 2
    %v282 = vxor.u32 %v265, 2147483648
    %v283 = vsel %vm281, %v282, %v273
    %v284 = vsel %vm277, %v280, %v283
    %v285 = vsel %vm274, nan, %v284
    %v286 = vpack.c.bf16 %v285, %v285
    %v287 = vld [vmem:[#allocation8] sm:$0xff]
    %v288 = vld [vmem:[#allocation8 + $0x8] sm:$0xff]
    %v289 = vld [vmem:[#allocation8 + $0x10] sm:$0xff]
    %v290 = vld [vmem:[#allocation8 + $0x18] sm:$0xff]
    %v291 = vld [vmem:[#allocation8 + $0x20] sm:$0xff]
    %v292 = vld [vmem:[#allocation8 + $0x28] sm:$0xff]
    %v293 = vld [vmem:[#allocation8 + $0x30] sm:$0xff]
    %v294 = vld [vmem:[#allocation8 + $0x38] sm:$0xff]
    %v295 = vld [vmem:[%s7] sm:$0x3]
    %v297 = vperm.slane %v295, 0
    %v298 = vperm.slane %v295, 1
    %v309 = vunpack.c.l.b16 %v287
    %v310 = vunpack.c.h.b16 %v287
    %v311 = vunpack.c.l.b16 %v288
    %v312 = vunpack.c.h.b16 %v288
    %v313 = vunpack.c.l.b16 %v289
    %v314 = vunpack.c.h.b16 %v289
    %v315 = vunpack.c.l.b16 %v290
    %v316 = vunpack.c.h.b16 %v290
    %v317 = vunpack.c.l.b16 %v291
    %v318 = vunpack.c.h.b16 %v291
    %v319 = vunpack.c.l.b16 %v292
    %v320 = vunpack.c.h.b16 %v292
    %v321 = vunpack.c.l.b16 %v293
    %v322 = vunpack.c.h.b16 %v293
    %v323 = vunpack.c.l.b16 %v294
    %v324 = vunpack.c.h.b16 %v294
    %v325 = vpack.c.b16 %v311, %v309
    %v326 = vpack.c.b16 %v312, %v310
    %v327 = vpack.c.b16 %v315, %v313
    %v328 = vpack.c.b16 %v316, %v314
    %v329 = vpack.c.b16 %v319, %v317
    %v330 = vpack.c.b16 %v320, %v318
    %v331 = vpack.c.b16 %v323, %v321
    %v332 = vpack.c.b16 %v324, %v322
    %vm341 = vcmask 523264
    %v343 = vsel %vm341, %v286, 0
    %345 = vmatpush.bf16.msra.mxu0 0
    %346 = vmatpush.bf16.msra.mxu0 0
    %347 = vmatpush.bf16.msra.mxu0 0
    %348 = vmatpush.bf16.msra.mxu0 0
    %349 = vmatpush.bf16.msra.mxu0 %v331
    %350 = vmatpush.bf16.msra.mxu0 %v329
    %351 = vmatpush.bf16.msra.mxu0 %v327
    %352 = vmatpush.bf16.msra.mxu0 %v325
    %353 = vmatmul.bf16.gmra.mxu0 %v343
    %v354 = vpop.f32.mrf.mxu0
    %v355 = vadd.f32 %v297, %v354
    %v356 = vpop.f32.mrf.mxu0
    %357 = vdwg.mxu0
    %358 = vmatpush.bf16.msra.mxu0 0
    %359 = vmatpush.bf16.msra.mxu0 0
    %360 = vmatpush.bf16.msra.mxu0 0
    %361 = vmatpush.bf16.msra.mxu0 0
    %362 = vmatpush.bf16.msra.mxu0 %v332
    %363 = vmatpush.bf16.msra.mxu0 %v330
    %364 = vmatpush.bf16.msra.mxu0 %v328
    %365 = vmatpush.bf16.msra.mxu0 %v326
    %366 = vmatmul.bf16.gmra.mxu0 %v343
    %v367 = vpop.f32.mrf.mxu0
    %v368 = vadd.f32 %v298, %v367
    %v369 = vpop.f32.mrf.mxu0
    %370 = vdwg.mxu0
    %v371 = vld [vmem:[%s2] sm:$0x3]
    %373 = vrot.lane.b32.xlu0 %v98, 2
    %v374 = vpop.permute.xlu0 %373
    %v376 = vmul.f32 %v112, %v374
    %377 = vrot.lane.b32.xlu0 %v98, 1
    %v378 = vpop.permute.xlu0 %377
    %v380 = vmul.f32 %v112, %v378
    %382 = vset.pattern.permute.xlu0 2
    %383 = vperm.xlu0 %382, %v376
    %v384 = vpop.permute.xlu0 %383
    %v386 = vperm.slane %v371, 0
    %v387 = vmul.f32 %v384, %v386
    %389 = vset.pattern.permute.xlu0 2
    %390 = vperm.xlu0 %389, %v380
    %v391 = vpop.permute.xlu0 %390
    %v393 = vperm.slane %v371, 1
    %v394 = vmul.f32 %v391, %v393
    %v395 = vadd.f32 %v387, %v394
    %v396 = vadd.f32 %v395, %v355
    %v397 = vxor.u32 %v396, 2147483648
    %v398 = vmul.f32 %v397, 1.442695
    %v399 = vpow.pop %v398
    %v400 = vadd.f32 %v399, 1.0
    %v401 = vrcp.pop %v400
    %v402 = vmul.f32 %v400, %v401
    %v403 = vsub.f32 1.0, %v402
    %v404 = vmul.f32 %v401, %v403
    %v405 = vadd.f32 %v401, %v404
    %vm406 = vweird.f32 %v400
    %vm407 = vweird.f32 %v401
    %vm408 = vmor %vm406, %vm407
    %v409 = vsel %vm408, %v401, %v405
    %v410 = vand.u32 2147483647, %v400
    %vm411 = vcmp.eq.f32.partialorder %v410, 8.507059e+37
    %v412 = vand.u32 %v400, 2147483648
    %v413 = vor.u32 1.1754944e-38, %v412
    %v414 = vsel %vm411, %v413, %v409
    %v415 = vmul.f32 1.0, %v414
    %v416 = vmul.f32 %v396, %v415
    %v417 = vpack.c.bf16 %v416, %v416
    %v418 = vld [vmem:[%s3] sm:$0xf]
    %v419 = vld [vmem:[%s3 + $0x4] sm:$0xf]
    %v420 = vld [vmem:[%s3 + $0x8] sm:$0xf]
    %v421 = vld [vmem:[%s3 + $0xc] sm:$0xf]
    %v422 = vld [vmem:[%s3 + $0x10] sm:$0xf]
    %v423 = vld [vmem:[%s3 + $0x14] sm:$0xf]
    %v424 = vld [vmem:[%s3 + $0x18] sm:$0xf]
    %v425 = vld [vmem:[%s3 + $0x1c] sm:$0xf]
    %v434 = vunpack.c.l.b16 %v418
    %v435 = vunpack.c.l.b16 %v419
    %v436 = vunpack.c.l.b16 %v420
    %v437 = vunpack.c.l.b16 %v421
    %v438 = vunpack.c.l.b16 %v422
    %v439 = vunpack.c.l.b16 %v423
    %v440 = vunpack.c.l.b16 %v424
    %v441 = vunpack.c.l.b16 %v425
    %v442 = vpack.c.b16 %v435, %v434
    %v443 = vpack.c.b16 %v437, %v436
    %v444 = vpack.c.b16 %v439, %v438
    %v445 = vpack.c.b16 %v441, %v440
    %451 = vrot.lane.b32.xlu0 %v355, 64
    %v452 = vpop.permute.xlu0 %451
    %v455 = vsel %vm341, %v417, 0
    %457 = vmatpush.bf16.msra.mxu0 0
    %458 = vmatpush.bf16.msra.mxu0 0
    %459 = vmatpush.bf16.msra.mxu0 0
    %460 = vmatpush.bf16.msra.mxu0 0
    %461 = vmatpush.bf16.msra.mxu0 %v445
    %462 = vmatpush.bf16.msra.mxu0 %v444
    %463 = vmatpush.bf16.msra.mxu0 %v443
    %464 = vmatpush.bf16.msra.mxu0 %v442
    %465 = vmatmul.bf16.gmra.mxu0 %v455
    %v466 = vpop.f32.mrf.mxu0
    %v467 = vadd.f32 %v452, %v466
    %v468 = vpop.f32.mrf.mxu0
    %469 = vdwg.mxu0
    %v470 = vxor.u32 %v467, 2147483648
    %v471 = vmul.f32 %v470, 1.442695
    %v472 = vpow.pop %v471
    %v473 = vadd.f32 %v472, 1.0
    %v474 = vrcp.pop %v473
    %v475 = vmul.f32 %v473, %v474
    %v476 = vsub.f32 1.0, %v475
    %v477 = vmul.f32 %v474, %v476
    %v478 = vadd.f32 %v474, %v477
    %vm479 = vweird.f32 %v473
    %vm480 = vweird.f32 %v474
    %vm481 = vmor %vm479, %vm480
    %v482 = vsel %vm481, %v474, %v478
    %v483 = vand.u32 2147483647, %v473
    %vm484 = vcmp.eq.f32.partialorder %v483, 8.507059e+37
    %v485 = vand.u32 %v473, 2147483648
    %v486 = vor.u32 1.1754944e-38, %v485
    %v487 = vsel %vm484, %v486, %v482
    %v488 = vmul.f32 1.0, %v487
    %v489 = vmul.f32 %v467, %v488
    %v490 = vpack.c.bf16 %v489, %v489
    %v491 = vld [vmem:[#allocation5] sm:$0xf]
    %v492 = vld [vmem:[#allocation5 + $0x4] sm:$0xf]
    %v493 = vld [vmem:[#allocation5 + $0x8] sm:$0xf]
    %v494 = vld [vmem:[#allocation5 + $0xc] sm:$0xf]
    %v495 = vld [vmem:[#allocation5 + $0x10] sm:$0xf]
    %v496 = vld [vmem:[#allocation5 + $0x14] sm:$0xf]
    %v497 = vld [vmem:[#allocation5 + $0x18] sm:$0xf]
    %v498 = vld [vmem:[#allocation5 + $0x1c] sm:$0xf]
    %v507 = vunpack.c.l.b16 %v491
    %v508 = vunpack.c.l.b16 %v492
    %v509 = vunpack.c.l.b16 %v493
    %v510 = vunpack.c.l.b16 %v494
    %v511 = vunpack.c.l.b16 %v495
    %v512 = vunpack.c.l.b16 %v496
    %v513 = vunpack.c.l.b16 %v497
    %v514 = vunpack.c.l.b16 %v498
    %v515 = vpack.c.b16 %v508, %v507
    %v516 = vpack.c.b16 %v510, %v509
    %v517 = vpack.c.b16 %v512, %v511
    %v518 = vpack.c.b16 %v514, %v513
    %v524 = vsel %vm341, %v490, 0
    %526 = vmatpush.bf16.msra.mxu0 0
    %527 = vmatpush.bf16.msra.mxu0 0
    %528 = vmatpush.bf16.msra.mxu0 0
    %529 = vmatpush.bf16.msra.mxu0 0
    %530 = vmatpush.bf16.msra.mxu0 %v518
    %531 = vmatpush.bf16.msra.mxu0 %v517
    %532 = vmatpush.bf16.msra.mxu0 %v516
    %533 = vmatpush.bf16.msra.mxu0 %v515
    %534 = vmatmul.bf16.gmra.mxu0 %v524
    %v535 = vpop.f32.mrf.mxu0
    %v536 = vadd.f32 %v368, %v535
    %v537 = vpop.f32.mrf.mxu0
    %538 = vdwg.mxu0
    %v539 = vxor.u32 %v536, 2147483648
    %v540 = vmul.f32 %v539, 1.442695
    %v541 = vpow.pop %v540
    %v542 = vadd.f32 %v541, 1.0
    %v543 = vrcp.pop %v542
    %v544 = vmul.f32 %v542, %v543
    %v545 = vsub.f32 1.0, %v544
    %v546 = vmul.f32 %v543, %v545
    %v547 = vadd.f32 %v543, %v546
    %vm548 = vweird.f32 %v542
    %vm549 = vweird.f32 %v543
    %vm550 = vmor %vm548, %vm549
    %v551 = vsel %vm550, %v543, %v547
    %v552 = vand.u32 2147483647, %v542
    %vm553 = vcmp.eq.f32.partialorder %v552, 8.507059e+37
    %v554 = vand.u32 %v542, 2147483648
    %v555 = vor.u32 1.1754944e-38, %v554
    %v556 = vsel %vm553, %v555, %v551
    %v557 = vmul.f32 1.0, %v556
    %v558 = vmul.f32 %v536, %v557
    %v559 = vpack.c.bf16 %v558, %v558
    %v560 = vld [vmem:[#allocation7] sm:$0xf]
    %v561 = vld [vmem:[#allocation7 + $0x4] sm:$0xf]
    %v562 = vld [vmem:[#allocation7 + $0x8] sm:$0xf]
    %v563 = vld [vmem:[#allocation7 + $0xc] sm:$0xf]
    %v564 = vld [vmem:[#allocation7 + $0x10] sm:$0xf]
    %v565 = vld [vmem:[#allocation7 + $0x14] sm:$0xf]
    %v566 = vld [vmem:[#allocation7 + $0x18] sm:$0xf]
    %v567 = vld [vmem:[#allocation7 + $0x1c] sm:$0xf]
    %v576 = vunpack.c.l.b16 %v560
    %v577 = vunpack.c.l.b16 %v561
    %v578 = vunpack.c.l.b16 %v562
    %v579 = vunpack.c.l.b16 %v563
    %v580 = vunpack.c.l.b16 %v564
    %v581 = vunpack.c.l.b16 %v565
    %v582 = vunpack.c.l.b16 %v566
    %v583 = vunpack.c.l.b16 %v567
    %v584 = vpack.c.b16 %v577, %v576
    %v585 = vpack.c.b16 %v579, %v578
    %v586 = vpack.c.b16 %v581, %v580
    %v587 = vpack.c.b16 %v583, %v582
    %593 = vrot.lane.b32.xlu0 %v368, 64
    %v594 = vpop.permute.xlu0 %593
    %v597 = vsel %vm341, %v559, 0
    %599 = vmatpush.bf16.msra.mxu0 0
    %600 = vmatpush.bf16.msra.mxu0 0
    %601 = vmatpush.bf16.msra.mxu0 0
    %602 = vmatpush.bf16.msra.mxu0 0
    %603 = vmatpush.bf16.msra.mxu0 %v587
    %604 = vmatpush.bf16.msra.mxu0 %v586
    %605 = vmatpush.bf16.msra.mxu0 %v585
    %606 = vmatpush.bf16.msra.mxu0 %v584
    %607 = vmatmul.bf16.gmra.mxu0 %v597
    %v608 = vpop.f32.mrf.mxu0
    %v609 = vadd.f32 %v594, %v608
    %v610 = vpop.f32.mrf.mxu0
    %611 = vdwg.mxu0
    %v612 = vxor.u32 %v609, 2147483648
    %v613 = vmul.f32 %v612, 1.442695
    %v614 = vpow.pop %v613
    %v615 = vadd.f32 %v614, 1.0
    %v616 = vrcp.pop %v615
    %v617 = vmul.f32 %v615, %v616
    %v618 = vsub.f32 1.0, %v617
    %v619 = vmul.f32 %v616, %v618
    %v620 = vadd.f32 %v616, %v619
    %vm621 = vweird.f32 %v615
    %vm622 = vweird.f32 %v616
    %vm623 = vmor %vm621, %vm622
    %v624 = vsel %vm623, %v616, %v620
    %v625 = vand.u32 2147483647, %v615
    %vm626 = vcmp.eq.f32.partialorder %v625, 8.507059e+37
    %v627 = vand.u32 %v615, 2147483648
    %v628 = vor.u32 1.1754944e-38, %v627
    %v629 = vsel %vm626, %v628, %v624
    %v630 = vmul.f32 1.0, %v629
    %v631 = vmul.f32 %v609, %v630
    %v632 = vpack.c.bf16 %v631, %v631
    %v633 = vld [vmem:[%s8] sm:$0xf]
    %v634 = vld [vmem:[%s8 + $0x4] sm:$0xf]
    %v635 = vld [vmem:[%s8 + $0x8] sm:$0xf]
    %v636 = vld [vmem:[%s8 + $0xc] sm:$0xf]
    %v637 = vld [vmem:[%s8 + $0x10] sm:$0xf]
    %v638 = vld [vmem:[%s8 + $0x14] sm:$0xf]
    %v639 = vld [vmem:[%s8 + $0x18] sm:$0xf]
    %v640 = vld [vmem:[%s8 + $0x1c] sm:$0xf]
    %v641 = vld [vmem:[%s9] sm:$0x1]
    %v643 = vperm.slane %v641, 0
    %v653 = vunpack.c.l.b16 %v633
    %v654 = vunpack.c.l.b16 %v634
    %v655 = vunpack.c.l.b16 %v635
    %v656 = vunpack.c.l.b16 %v636
    %v657 = vunpack.c.l.b16 %v637
    %v658 = vunpack.c.l.b16 %v638
    %v659 = vunpack.c.l.b16 %v639
    %v660 = vunpack.c.l.b16 %v640
    %v661 = vpack.c.b16 %v654, %v653
    %v662 = vpack.c.b16 %v656, %v655
    %v663 = vpack.c.b16 %v658, %v657
    %v664 = vpack.c.b16 %v660, %v659
    %v670 = vsel %vm341, %v632, 0
    %672 = vmatpush.bf16.msra.mxu0 0
    %673 = vmatpush.bf16.msra.mxu0 0
    %674 = vmatpush.bf16.msra.mxu0 0
    %675 = vmatpush.bf16.msra.mxu0 0
    %676 = vmatpush.bf16.msra.mxu0 %v664
    %677 = vmatpush.bf16.msra.mxu0 %v663
    %678 = vmatpush.bf16.msra.mxu0 %v662
    %679 = vmatpush.bf16.msra.mxu0 %v661
    %680 = vmatmul.bf16.gmra.mxu0 %v670
    %v681 = vpop.f32.mrf.mxu0
    %v682 = vadd.f32 %v643, %v681
    %v683 = vpop.f32.mrf.mxu0
    %684 = vdwg.mxu0
    %686 = vset.pattern.permute.xlu0 2
    %687 = vperm.xlu0 %686, %v114
    %v688 = vpop.permute.xlu0 %687
    %v690 = vmul.f32 %v688, %v98
    %692 = vset.pattern.permute.xlu0 2
    %693 = vperm.xlu0 %692, %v116
    %v694 = vpop.permute.xlu0 %693
    %v696 = vmul.f32 %v694, %v682
    %v697 = vadd.f32 %v690, %v696
    %vm698 = vcmask 64512
    %699 = vst.msk [vmem:[#allocation10] sm:$0xff] %vm698, %v697
    // Predicated region
    $region58: #{tpu_custom_call.1} parent=1 // pred_check
      _
    $region59: #{tpu_custom_call.1} parent=1 // pred_check_branch
      %701 = sbr.rel (0) target = $region61
    $region60: #{tpu_custom_call.1} parent=1 // pred_region
      %703 = vsyncadd [#allocation4], 0
      %s705 = sshll.u32 [#allocation10], 4
      %s706 = int_to_ptr.vmem [resolvable:$true] %s705
      %s707 = sshll.u32 %s10, 4
      %s708 = int_to_ptr.hbm [resolvable:$true] %s707
      %710 = dma.vmem_to_hbm [thread:$0]  %s706, 128, %s708, [#allocation4]
    $region61: #{tpu_custom_call.1} parent=1 // pred_fallthru
      _
    // Predicated region
    $region62: #{tpu_custom_call.1} parent=1 // pred_check
      _
    $region63: #{tpu_custom_call.1} parent=1 // pred_check_branch
      %712 = sbr.rel (0) target = $region65
    $region64: #{tpu_custom_call.1} parent=1 // pred_region
      %714 = dma.done [#allocation4], 128
    $region65: #{tpu_custom_call.1} parent=1 // pred_fallthru
      _
    %715 = vsyncpa [#allocation3], 1
    %716 = vsyncpa [#allocation6], 1
    %717 = vsyncpa [#allocation9], 1
    %718 = vsyncpa [#allocation4], 1

</llo_original>
